<compile_context>
chip_gen: v5e
topology: v5e:2x2
jax: 0.10.0
libtpu: 0.0.40
codegen_flags: <defaults>
</compile_context>

<pallas_src>
import jax
import jax.numpy as jnp
from jax.experimental import pallas as pl
from jax.experimental.pallas import tpu as pltpu


def _sparse_maxpool_kernel(x_ref, m_ref, sel_e_ref, sel_o_ref, xo_ref, mo_ref):
    # x_ref / m_ref : (2*TR, TW)  -- two input rows per output row
    # sel_*_ref     : (TW, TWo)   -- one-hot even/odd column selectors
    # xo_ref/mo_ref : (TR, TWo)
    tr = xo_ref.shape[0]

    # Vertical (row-pair) reduction via sublane-strided loads; mask multiply
    # is fused into the max chain (no (k*k, ...) temporary).  Internals in f32.
    x_e = x_ref[pl.ds(0, tr, 2), :].astype(jnp.float32)
    x_o = x_ref[pl.ds(1, tr, 2), :].astype(jnp.float32)
    m_e = m_ref[pl.ds(0, tr, 2), :].astype(jnp.float32)
    m_o = m_ref[pl.ds(1, tr, 2), :].astype(jnp.float32)

    xr = jnp.maximum(x_e * m_e, x_o * m_o)          # (TR, TW)
    mr = jnp.maximum(m_e, m_o)                      # (TR, TW)

    # Horizontal (column-pair) reduction + lane compaction TW -> TW/2 via two
    # one-hot selection matmuls (MXU is idle in this kernel; exact selection).
    sel_e = sel_e_ref[...]
    sel_o = sel_o_ref[...]
    x_pool = jnp.maximum(
        jnp.dot(xr, sel_e, preferred_element_type=jnp.float32),
        jnp.dot(xr, sel_o, preferred_element_type=jnp.float32))
    m_pool = jnp.maximum(
        jnp.dot(mr, sel_e, preferred_element_type=jnp.float32),
        jnp.dot(mr, sel_o, preferred_element_type=jnp.float32))

    mc = jnp.maximum(m_pool, 1e-5)                  # torch.clamp(m, min=1e-5)
    inv = pl.reciprocal(mc, approx=True)            # EUP slot; VPU stays free
    xo_ref[...] = (x_pool * inv).astype(xo_ref.dtype)
    mo_ref[...] = m_pool.astype(mo_ref.dtype)


def _pick_col_tile(W):
    """Width tile: full width when small; otherwise a multiple of 256 so the
    pooled output tile stays a multiple of 128 lanes (unmasked stores)."""
    if W <= 512:
        return W
    for tw in (1024, 768, 512, 256):
        if W % tw == 0:
            return tw
    return W  # fallback: un-tiled width


def _pick_row_tile(Ro, TW, itemsize, target_bytes=2 << 20, min_row_blocks=4):
    """Output-row tile.  Input block is (2*TR, TW): aim for ~2 MiB input
    blocks, keep TR a multiple of 8, and keep >= min_row_blocks grid steps
    when possible (pipelining + v7x megacore)."""
    if Ro <= 8:
        return Ro
    tr = max(8, (target_bytes // (2 * TW * itemsize)) // 8 * 8)
    cap = max(8, (Ro // min_row_blocks) // 8 * 8)
    tr = min(tr, cap, (Ro // 8) * 8)
    t = tr
    while t >= 8:                 # prefer an exact divisor (no ragged edge)
        if Ro % t == 0:
            return t
        t -= 8
    return tr


def sparse_max_pool(x, m, kernel_size=2):
    """SparseMaxPool forward. x, m: (N, C, H, W) -> (x_out, m_out)."""
    assert kernel_size == 2, "kernel specializes the module defaults (k=2)"
    N, C, H, W = x.shape
    assert m.shape == x.shape
    assert H % 2 == 0 and W % 2 == 0, "no-padding MaxPool2d with stride=2"
    Ho, Wo = H // 2, W // 2
    R, Ro = N * C * H, N * C * Ho

    # Free views (pure metadata): 2x2 windows of NCHW == adjacent
    # (row-pair, col-pair) of the (N*C*H, W) view because H is even.
    x2 = x.reshape(R, W)
    m2 = m.reshape(R, W)

    TW = _pick_col_tile(W)
    TWo = TW // 2
    TR = _pick_row_tile(Ro, TW, jnp.dtype(x.dtype).itemsize)

    # One-hot column selectors (even / odd column of each pair); tiny, built
    # once outside the kernel and held resident (constant block index).
    wi = jnp.arange(TW, dtype=jnp.int32)[:, None]
    jo = jnp.arange(TWo, dtype=jnp.int32)[None, :]
    sel_e = (wi == 2 * jo).astype(jnp.float32)
    sel_o = (wi == 2 * jo + 1).astype(jnp.float32)

    grid = (pl.cdiv(Ro, TR), W // TW)

    in_specs = [
        pl.BlockSpec((2 * TR, TW), lambda i, j: (i, j)),   # x (row pairs)
        pl.BlockSpec((2 * TR, TW), lambda i, j: (i, j)),   # m (row pairs)
        pl.BlockSpec((TW, TWo), lambda i, j: (0, 0)),      # sel_even
        pl.BlockSpec((TW, TWo), lambda i, j: (0, 0)),      # sel_odd
    ]
    out_specs = [
        pl.BlockSpec((TR, TWo), lambda i, j: (i, j)),
        pl.BlockSpec((TR, TWo), lambda i, j: (i, j)),
    ]

    xo, mo = pl.pallas_call(
        _sparse_maxpool_kernel,
        grid=grid,
        in_specs=in_specs,
        out_specs=out_specs,
        out_shape=[
            jax.ShapeDtypeStruct((Ro, Wo), x.dtype),
            jax.ShapeDtypeStruct((Ro, Wo), m.dtype),
        ],
        compiler_params=pltpu.CompilerParams(
            dimension_semantics=("parallel", "parallel")),
    )(x2, m2, sel_e, sel_o)

    return xo.reshape(N, C, Ho, Wo), mo.reshape(N, C, Ho, Wo)


def _reference(x, m):
    """Pure-JAX reference mirroring the PyTorch module."""
    def maxpool2x2(a):
        return jax.lax.reduce_window(
            a, -jnp.inf, jax.lax.max, (1, 1, 2, 2), (1, 1, 2, 2), "VALID")
    xp = maxpool2x2(x * m)
    mp = maxpool2x2(m)
    mc = jnp.maximum(mp, 1e-5)
    return xp * (1.0 / mc), mp


if __name__ == "__main__":
    key = jax.random.PRNGKey(0)
    kx, km = jax.random.split(key)
    N, C, H, W = 2, 4, 16, 16
    x = jax.random.normal(kx, (N, C, H, W), dtype=jnp.float32)
    # sparse 0/1 mask, as this module expects
    m = (jax.random.uniform(km, (N, C, H, W)) > 0.5).astype(jnp.float32)

    xo, mo = sparse_max_pool(x, m)
    jax.block_until_ready((xo, mo))

    rx, rm = _reference(x, m)
    assert xo.shape == (N, C, H // 2, W // 2) and mo.shape == xo.shape
    # m path is exact (0/1 values through one-hot selection).
    assert jnp.allclose(mo, rm, atol=1e-6), "m mismatch vs reference"
    # x path goes through the approximate (EUP) reciprocal -> allow tiny
    # relative error; a real pooling/indexing bug would be O(1) off.
    assert jnp.allclose(xo, rx, rtol=2e-3, atol=1e-6), "x mismatch vs reference"
    print("KERNEL_OK")
</pallas_src>

<mosaic_0001>
module attributes {stable_mosaic.version = 11 : i64} {
  func.func @_sparse_maxpool_kernel(%arg0: i32, %arg1: i32, %arg2: memref<32x16xf32, #tpu.memory_space<vmem>>, %arg3: memref<32x16xf32, #tpu.memory_space<vmem>>, %arg4: memref<16x8xf32, #tpu.memory_space<vmem>>, %arg5: memref<16x8xf32, #tpu.memory_space<vmem>>, %arg6: memref<16x8xf32, #tpu.memory_space<vmem>>, %arg7: memref<16x8xf32, #tpu.memory_space<vmem>>) attributes {dimension_semantics = [#tpu.dimension_semantics<parallel>, #tpu.dimension_semantics<parallel>], iteration_bounds = array<i64: 4, 1>, scalar_prefetch = 0 : i64, scratch_operands = 0 : i64, tpu.core_type = #tpu.core_type<tc>, window_params = [{transform_indices = @transform_0, window_bounds = array<i64: 32, 16>}, {transform_indices = @transform_1, window_bounds = array<i64: 32, 16>}, {pipeline_mode = #tpu.pipeline_mode<synchronous>, transform_indices = @transform_2, window_bounds = array<i64: 16, 8>}, {pipeline_mode = #tpu.pipeline_mode<synchronous>, transform_indices = @transform_3, window_bounds = array<i64: 16, 8>}, {transform_indices = @transform_4, window_bounds = array<i64: 16, 8>}, {transform_indices = @transform_5, window_bounds = array<i64: 16, 8>}]} {
    %c0 = arith.constant 0 : index
    %c0_0 = arith.constant 0 : index
    %0 = tpu.strided_load %arg2[%c0, %c0_0] {strides = array<i32: 2, 1>} : memref<32x16xf32, #tpu.memory_space<vmem>>, vector<16x16xf32>
    %c1 = arith.constant 1 : index
    %c0_1 = arith.constant 0 : index
    %1 = tpu.strided_load %arg2[%c1, %c0_1] {strides = array<i32: 2, 1>} : memref<32x16xf32, #tpu.memory_space<vmem>>, vector<16x16xf32>
    %c0_2 = arith.constant 0 : index
    %c0_3 = arith.constant 0 : index
    %2 = tpu.strided_load %arg3[%c0_2, %c0_3] {strides = array<i32: 2, 1>} : memref<32x16xf32, #tpu.memory_space<vmem>>, vector<16x16xf32>
    %c1_4 = arith.constant 1 : index
    %c0_5 = arith.constant 0 : index
    %3 = tpu.strided_load %arg3[%c1_4, %c0_5] {strides = array<i32: 2, 1>} : memref<32x16xf32, #tpu.memory_space<vmem>>, vector<16x16xf32>
    %4 = arith.mulf %0, %2 : vector<16x16xf32>
    %5 = arith.mulf %1, %3 : vector<16x16xf32>
    %6 = arith.maximumf %4, %5 : vector<16x16xf32>
    %7 = arith.maximumf %2, %3 : vector<16x16xf32>
    %c0_6 = arith.constant 0 : index
    %c0_7 = arith.constant 0 : index
    %8 = vector.load %arg4[%c0_6, %c0_7] : memref<16x8xf32, #tpu.memory_space<vmem>>, vector<16x8xf32>
    %c0_8 = arith.constant 0 : index
    %c0_9 = arith.constant 0 : index
    %9 = vector.load %arg5[%c0_8, %c0_9] : memref<16x8xf32, #tpu.memory_space<vmem>>, vector<16x8xf32>
    %cst = arith.constant dense<0.000000e+00> : vector<16x8xf32>
    %10 = tpu.matmul %6, %8, %cst {dimension_numbers = #tpu.dot_dimension_numbers<[1], [0], [0], [1], [0, 0, 1, 1], [], []>} : vector<16x16xf32>, vector<16x8xf32>, vector<16x8xf32> -> vector<16x8xf32>
    %cst_10 = arith.constant dense<0.000000e+00> : vector<16x8xf32>
    %11 = tpu.matmul %6, %9, %cst_10 {dimension_numbers = #tpu.dot_dimension_numbers<[1], [0], [0], [1], [0, 0, 1, 1], [], []>} : vector<16x16xf32>, vector<16x8xf32>, vector<16x8xf32> -> vector<16x8xf32>
    %12 = arith.maximumf %10, %11 : vector<16x8xf32>
    %cst_11 = arith.constant dense<0.000000e+00> : vector<16x8xf32>
    %13 = tpu.matmul %7, %8, %cst_11 {dimension_numbers = #tpu.dot_dimension_numbers<[1], [0], [0], [1], [0, 0, 1, 1], [], []>} : vector<16x16xf32>, vector<16x8xf32>, vector<16x8xf32> -> vector<16x8xf32>
    %cst_12 = arith.constant dense<0.000000e+00> : vector<16x8xf32>
    %14 = tpu.matmul %7, %9, %cst_12 {dimension_numbers = #tpu.dot_dimension_numbers<[1], [0], [0], [1], [0, 0, 1, 1], [], []>} : vector<16x16xf32>, vector<16x8xf32>, vector<16x8xf32> -> vector<16x8xf32>
    %15 = arith.maximumf %13, %14 : vector<16x8xf32>
    %cst_13 = arith.constant 9.99999974E-6 : f32
    %16 = vector.broadcast %cst_13 : f32 to vector<16x8xf32>
    %17 = arith.maximumf %15, %16 : vector<16x8xf32>
    %18 = tpu.reciprocal %17 {approx = true} : vector<16x8xf32> -> vector<16x8xf32>
    %19 = arith.mulf %12, %18 : vector<16x8xf32>
    %c0_14 = arith.constant 0 : index
    %c0_15 = arith.constant 0 : index
    %20 = vector.load %arg6[%c0_14, %c0_15] : memref<16x8xf32, #tpu.memory_space<vmem>>, vector<16x8xf32>
    tpu.vector_store %arg6[%c0_14, %c0_15], %19 {strides = array<i32>} : memref<16x8xf32, #tpu.memory_space<vmem>>, vector<16x8xf32>,
    %c0_16 = arith.constant 0 : index
    %c0_17 = arith.constant 0 : index
    %21 = vector.load %arg7[%c0_16, %c0_17] : memref<16x8xf32, #tpu.memory_space<vmem>>, vector<16x8xf32>
    tpu.vector_store %arg7[%c0_16, %c0_17], %15 {strides = array<i32>} : memref<16x8xf32, #tpu.memory_space<vmem>>, vector<16x8xf32>,
    return
  }
  func.func @transform_0(%arg0: i32, %arg1: i32) -> (i32, i32) {
    %c0_i32 = arith.constant 0 : i32
    return %arg0, %arg1 : i32, i32
  }
  func.func @transform_1(%arg0: i32, %arg1: i32) -> (i32, i32) {
    %c0_i32 = arith.constant 0 : i32
    return %arg0, %arg1 : i32, i32
  }
  func.func @transform_2(%arg0: i32, %arg1: i32) -> (i32, i32) {
    %c0_i32 = arith.constant 0 : i32
    %c0_i32_0 = arith.constant 0 : i32
    %c0_i32_1 = arith.constant 0 : i32
    return %c0_i32, %c0_i32_0 : i32, i32
  }
  func.func @transform_3(%arg0: i32, %arg1: i32) -> (i32, i32) {
    %c0_i32 = arith.constant 0 : i32
    %c0_i32_0 = arith.constant 0 : i32
    %c0_i32_1 = arith.constant 0 : i32
    return %c0_i32, %c0_i32_0 : i32, i32
  }
  func.func @transform_4(%arg0: i32, %arg1: i32) -> (i32, i32) {
    %c0_i32 = arith.constant 0 : i32
    return %arg0, %arg1 : i32, i32
  }
  func.func @transform_5(%arg0: i32, %arg1: i32) -> (i32, i32) {
    %c0_i32 = arith.constant 0 : i32
    return %arg0, %arg1 : i32, i32
  }
}

</mosaic_0001>

<llo_original>
// kernel: tpu_custom_call.1
$region0: #{tpu_custom_call.1}
  #allocation0 [shape = 'u32[]', space=smem, size = 0x4, offset = 0x4, fixed_abs, tag = 'smem constant byte address 0x4 - core index']
  #allocation1 [shape = 'u32[72,128]{1,0:T(1,128)}', space=vmem, size = 0x9000, scoped, tag = 'internal scratch']
  %s0 = inlined_call_operand.vmem [shape: f32[128,16], index: 0, kind: input, shape index: {}]
  %s1 = inlined_call_operand.vmem [shape: f32[128,16], index: 1, kind: input, shape index: {}]
  %s2 = inlined_call_operand.vmem [shape: f32[16,8], index: 2, kind: input, shape index: {}]
  %s3 = inlined_call_operand.vmem [shape: f32[16,8], index: 3, kind: input, shape index: {}]
  %s4 = inlined_call_operand.vmem [shape: f32[64,8], index: 4, kind: output, shape index: {0}]
  %s5 = inlined_call_operand.vmem [shape: f32[64,8], index: 5, kind: output, shape index: {1}]
  %6 = xla_tuple %s4, %s5
  %s7 = sld [smem:[#allocation0]]
  $region57: #{tpu_custom_call.1} parent=0
    _
  %s9 = ssub.s32 1, %s7
  %s10 = scalar_select 0, %s9, %s7
  loop: start=0, step=1, limit=6
  $region2: #{tpu_custom_call.1} parent=0 // loop_pre_header
    _
  $region3: #{tpu_custom_call.1} parent=0 // loop_header
    %s12 = sphi 0, %s16
    %p13 = scmp.ge.s32.totalorder %s12, 6
    %s19 = sphi 0, %s31
    %s20 = sphi 0, %s27
    %s21 = sphi 0, %s19
    %s22 = sphi 0, %s20
    %s23 = sphi 0, %s21
    %s24 = sphi 0, %s22
    %s36 = sphi 0, %s38
    %s39 = sphi 0, %s36
    %s40 = sphi 0, %s39
    %s56 = sphi 0, %s40
    %s64 = sphi 0, %s66
    %s67 = sphi 0, %s64
    %s68 = sphi 0, %s67
    %s84 = sphi 0, %s68
    %s88 = sphi 0, %s88
    %s90 = sphi 0, %s88
    %s91 = sphi 0, %s90
    %s105 = sphi 0, %s91
    %s109 = sphi 0, %s109
    %s111 = sphi 0, %s109
    %s112 = sphi 0, %s111
    %s126 = sphi 0, %s112
    %s134 = sphi 0, %s136
    %s137 = sphi 0, %s134
    %s138 = sphi 0, %s137
    %s154 = sphi 0, %s138
    %s162 = sphi 0, %s164
    %s165 = sphi 0, %s162
    %s166 = sphi 0, %s165
    %s182 = sphi 0, %s166
  $region4: #{tpu_custom_call.1} parent=0 // loop_header_branch
    %15 = sbr.rel (%p13) target = $region8
  $region5: #{tpu_custom_call.1} parent=0 // loop_body
    %s17 = ssub.s32 %s12, 1
    %s18 = ssub.s32 %s12, 2
    %s25 = sadd.s32 1, %s20
    %p26 = scmp.ge.s32.totalorder %s25, 1
    %s27 = scalar_select %p26, 0, %s25
    %s28 = sadd.s32 1, %s19
    %s29 = scalar_select %p26, %s28, %s19
    %p30 = scmp.ge.s32.totalorder %s29, 4
    %s31 = scalar_select %p30, 0, %s29
    %s32 = ssub.s32 %s19, %s31
    %s33 = ssub.s32 %s20, %s27
    %s34 = sor.u32 %s32, %s33
    %p35 = scmp.eq.s32.totalorder %s34, 0
    %s37 = sadd.s32 %s36, 1
    %s38 = scalar_select %p35, %s36, %s37
    %p41 = pneg %p35
    %p42 = scmp.eq.s32.totalorder %s12, 3
    %p43 = por %p41, %p42
    %p44 = scmp.ne.s32.totalorder %s36, %s39
    %p45 = scmp.eq.s32.totalorder %s12, 0
    %p46 = por %p44, %p45
    %p47 = scmp.ne.s32.totalorder %s36, %s39
    %p48 = scmp.eq.s32.totalorder %s17, 3
    %p49 = por %p47, %p48
    %p50 = scmp.ne.s32.totalorder %s39, %s40
    %p51 = scmp.eq.s32.totalorder %s17, 0
    %p52 = por %p50, %p51
    %p53 = scmp.ne.s32.totalorder %s39, %s40
    %p54 = scmp.eq.s32.totalorder %s18, 3
    %p55 = por %p53, %p54
    %p57 = scmp.ne.s32.totalorder %s40, %s56
    %p58 = scmp.eq.s32.totalorder %s18, 0
    %p59 = por %p57, %p58
    %s60 = ssub.s32 %s19, %s31
    %s61 = ssub.s32 %s20, %s27
    %s62 = sor.u32 %s60, %s61
    %p63 = scmp.eq.s32.totalorder %s62, 0
    %s65 = sadd.s32 %s64, 1
    %s66 = scalar_select %p63, %s64, %s65
    %p69 = pneg %p63
    %p70 = scmp.eq.s32.totalorder %s12, 3
    %p71 = por %p69, %p70
    %p72 = scmp.ne.s32.totalorder %s64, %s67
    %p73 = scmp.eq.s32.totalorder %s12, 0
    %p74 = por %p72, %p73
    %p75 = scmp.ne.s32.totalorder %s64, %s67
    %p76 = scmp.eq.s32.totalorder %s17, 3
    %p77 = por %p75, %p76
    %p78 = scmp.ne.s32.totalorder %s67, %s68
    %p79 = scmp.eq.s32.totalorder %s17, 0
    %p80 = por %p78, %p79
    %p81 = scmp.ne.s32.totalorder %s67, %s68
    %p82 = scmp.eq.s32.totalorder %s18, 3
    %p83 = por %p81, %p82
    %p85 = scmp.ne.s32.totalorder %s68, %s84
    %p86 = scmp.eq.s32.totalorder %s18, 0
    %p87 = por %p85, %p86
    %s89 = sadd.s32 %s88, 1
    %p92 = scmp.eq.s32.totalorder %s12, 3
    %p93 = scmp.ne.s32.totalorder %s88, %s90
    %p94 = scmp.eq.s32.totalorder %s12, 0
    %p95 = por %p93, %p94
    %p96 = scmp.ne.s32.totalorder %s88, %s90
    %p97 = scmp.eq.s32.totalorder %s17, 3
    %p98 = por %p96, %p97
    %p99 = scmp.ne.s32.totalorder %s90, %s91
    %p100 = scmp.eq.s32.totalorder %s17, 0
    %p101 = por %p99, %p100
    %p102 = scmp.ne.s32.totalorder %s90, %s91
    %p103 = scmp.eq.s32.totalorder %s18, 3
    %p104 = por %p102, %p103
    %p106 = scmp.ne.s32.totalorder %s91, %s105
    %p107 = scmp.eq.s32.totalorder %s18, 0
    %p108 = por %p106, %p107
    %s110 = sadd.s32 %s109, 1
    %p113 = scmp.eq.s32.totalorder %s12, 3
    %p114 = scmp.ne.s32.totalorder %s109, %s111
    %p115 = scmp.eq.s32.totalorder %s12, 0
    %p116 = por %p114, %p115
    %p117 = scmp.ne.s32.totalorder %s109, %s111
    %p118 = scmp.eq.s32.totalorder %s17, 3
    %p119 = por %p117, %p118
    %p120 = scmp.ne.s32.totalorder %s111, %s112
    %p121 = scmp.eq.s32.totalorder %s17, 0
    %p122 = por %p120, %p121
    %p123 = scmp.ne.s32.totalorder %s111, %s112
    %p124 = scmp.eq.s32.totalorder %s18, 3
    %p125 = por %p123, %p124
    %p127 = scmp.ne.s32.totalorder %s112, %s126
    %p128 = scmp.eq.s32.totalorder %s18, 0
    %p129 = por %p127, %p128
    %s130 = ssub.s32 %s19, %s31
    %s131 = ssub.s32 %s20, %s27
    %s132 = sor.u32 %s130, %s131
    %p133 = scmp.eq.s32.totalorder %s132, 0
    %s135 = sadd.s32 %s134, 1
    %s136 = scalar_select %p133, %s134, %s135
    %p139 = pneg %p133
    %p140 = scmp.eq.s32.totalorder %s12, 3
    %p141 = por %p139, %p140
    %p142 = scmp.ne.s32.totalorder %s134, %s137
    %p143 = scmp.eq.s32.totalorder %s12, 0
    %p144 = por %p142, %p143
    %p145 = scmp.ne.s32.totalorder %s134, %s137
    %p146 = scmp.eq.s32.totalorder %s17, 3
    %p147 = por %p145, %p146
    %p148 = scmp.ne.s32.totalorder %s137, %s138
    %p149 = scmp.eq.s32.totalorder %s17, 0
    %p150 = por %p148, %p149
    %p151 = scmp.ne.s32.totalorder %s137, %s138
    %p152 = scmp.eq.s32.totalorder %s18, 3
    %p153 = por %p151, %p152
    %p155 = scmp.ne.s32.totalorder %s138, %s154
    %p156 = scmp.eq.s32.totalorder %s18, 0
    %p157 = por %p155, %p156
    %s158 = ssub.s32 %s19, %s31
    %s159 = ssub.s32 %s20, %s27
    %s160 = sor.u32 %s158, %s159
    %p161 = scmp.eq.s32.totalorder %s160, 0
    %s163 = sadd.s32 %s162, 1
    %s164 = scalar_select %p161, %s162, %s163
    %p167 = pneg %p161
    %p168 = scmp.eq.s32.totalorder %s12, 3
    %p169 = por %p167, %p168
    %p170 = scmp.ne.s32.totalorder %s162, %s165
    %p171 = scmp.eq.s32.totalorder %s12, 0
    %p172 = por %p170, %p171
    %p173 = scmp.ne.s32.totalorder %s162, %s165
    %p174 = scmp.eq.s32.totalorder %s17, 3
    %p175 = por %p173, %p174
    %p176 = scmp.ne.s32.totalorder %s165, %s166
    %p177 = scmp.eq.s32.totalorder %s17, 0
    %p178 = por %p176, %p177
    %p179 = scmp.ne.s32.totalorder %s165, %s166
    %p180 = scmp.eq.s32.totalorder %s18, 3
    %p181 = por %p179, %p180
    %p183 = scmp.ne.s32.totalorder %s166, %s182
    %p184 = scmp.eq.s32.totalorder %s18, 0
    %p185 = por %p183, %p184
    %p186 = scmp.le.s32.totalorder 1, %s12
    %p187 = scmp.lt.s32.totalorder %s12, 5
    %p188 = pnand %p186, %p187
    %p189 = pneg %p188
    // Predicated region
    $region9: #{tpu_custom_call.1} parent=5 // pred_check
      _
    $region10: #{tpu_custom_call.1} parent=5 // pred_check_branch
      %191 = sbr.rel (%p188) target = $region12
    $region11: #{tpu_custom_call.1} parent=5 // pred_region
      %s192 = ssub.s32 %s12, 1
      // Predicated region
      $region13: #{tpu_custom_call.1} parent=11 // pred_check
        %p193 = pneg %p101
      $region14: #{tpu_custom_call.1} parent=11 // pred_check_branch
        %195 = sbr.rel (%p193) target = $region16
      $region15: #{tpu_custom_call.1} parent=11 // pred_region
        _
      $region16: #{tpu_custom_call.1} parent=11 // pred_fallthru
        _
      // Predicated region
      $region17: #{tpu_custom_call.1} parent=11 // pred_check
        %p196 = pneg %p122
      $region18: #{tpu_custom_call.1} parent=11 // pred_check_branch
        %198 = sbr.rel (%p196) target = $region20
      $region19: #{tpu_custom_call.1} parent=11 // pred_region
        _
      $region20: #{tpu_custom_call.1} parent=11 // pred_fallthru
        _
    $region12: #{tpu_custom_call.1} parent=5 // pred_fallthru
      _
    %p199 = scmp.lt.s32.totalorder %s12, 4
    // Predicated region
    $region21: #{tpu_custom_call.1} parent=5 // pred_check
      %p200 = pneg %p199
    $region22: #{tpu_custom_call.1} parent=5 // pred_check_branch
      %202 = sbr.rel (%p200) target = $region24
    $region23: #{tpu_custom_call.1} parent=5 // pred_region
      // Predicated region
      $region25: #{tpu_custom_call.1} parent=23 // pred_check
        %p203 = pneg %p46
      $region26: #{tpu_custom_call.1} parent=23 // pred_check_branch
        %205 = sbr.rel (%p203) target = $region28
      $region27: #{tpu_custom_call.1} parent=23 // pred_region
        %s206 = smul.u32 4, %s19
        %p207 = scmp.lt.s32.totalorder %s206, 15
        %s208 = scalar_select %p207, %s206, 15
        %p209 = scmp.lt.s32.totalorder %s20, 0
        %s210 = scalar_select %p209, %s20, 0
        %s211 = sadd.s32 %s210, %s208
        %s212 = smul.addr %s211, 8
        %s213 = scalar_lea.vmem %s0, %s212
        %s214 = smul.u32 4, %s19
      $region28: #{tpu_custom_call.1} parent=23 // pred_fallthru
        _
      // Predicated region
      $region29: #{tpu_custom_call.1} parent=23 // pred_check
        %p215 = pneg %p74
      $region30: #{tpu_custom_call.1} parent=23 // pred_check_branch
        %217 = sbr.rel (%p215) target = $region32
      $region31: #{tpu_custom_call.1} parent=23 // pred_region
        %s218 = smul.u32 4, %s19
        %p219 = scmp.lt.s32.totalorder %s218, 15
        %s220 = scalar_select %p219, %s218, 15
        %p221 = scmp.lt.s32.totalorder %s20, 0
        %s222 = scalar_select %p221, %s20, 0
        %s223 = sadd.s32 %s222, %s220
        %s224 = smul.addr %s223, 8
        %s225 = scalar_lea.vmem %s1, %s224
        %s226 = smul.u32 4, %s19
      $region32: #{tpu_custom_call.1} parent=23 // pred_fallthru
        _
    $region24: #{tpu_custom_call.1} parent=5 // pred_fallthru
      _
    %p227 = scmp.le.s32.totalorder 1, %s12
    %p228 = scmp.lt.s32.totalorder %s12, 5
    %p229 = pnand %p227, %p228
    %p230 = pneg %p229
    // Predicated region
    $region33: #{tpu_custom_call.1} parent=5 // pred_check
      _
    $region34: #{tpu_custom_call.1} parent=5 // pred_check_branch
      %232 = sbr.rel (%p229) target = $region36
    $region35: #{tpu_custom_call.1} parent=5 // pred_region
      %s233 = ssub.s32 %s12, 1
      %s234 = smul.u32 4, %s21
      %p235 = scmp.lt.s32.totalorder %s234, 15
      %s236 = scalar_select %p235, %s234, 15
      %p237 = scmp.lt.s32.totalorder %s22, 0
      %s238 = scalar_select %p237, %s22, 0
      %s239 = sadd.s32 %s238, %s236
      %s240 = smul.addr %s239, 8
      %s241 = scalar_lea.vmem %s0, %s240
      %p242 = pneg %p52
      %p243 = pneg %p49
      %s244 = smul.u32 4, %s21
      %p245 = scmp.lt.s32.totalorder %s244, 15
      %s246 = scalar_select %p245, %s244, 15
      %p247 = scmp.lt.s32.totalorder %s22, 0
      %s248 = scalar_select %p247, %s22, 0
      %s249 = sadd.s32 %s248, %s246
      %s250 = smul.addr %s249, 8
      %s251 = scalar_lea.vmem %s1, %s250
      %p252 = pneg %p80
      %p253 = pneg %p77
      %p254 = pneg %p101
      %p255 = pneg %p98
      %p256 = pneg %p122
      %p257 = pneg %p119
      %p258 = pneg %p150
      %p259 = pneg %p147
      %s260 = smul.u32 2, %s21
      %p261 = scmp.lt.s32.totalorder %s260, 7
      %s262 = scalar_select %p261, %s260, 7
      %p263 = scmp.lt.s32.totalorder %s22, 0
      %s264 = scalar_select %p263, %s22, 0
      %s265 = sadd.s32 %s264, %s262
      %s266 = smul.addr %s265, 8
      %s267 = scalar_lea.vmem %s4, %s266
      %p268 = pneg %p178
      %p269 = pneg %p175
      %s270 = smul.u32 2, %s21
      %p271 = scmp.lt.s32.totalorder %s270, 7
      %s272 = scalar_select %p271, %s270, 7
      %p273 = scmp.lt.s32.totalorder %s22, 0
      %s274 = scalar_select %p273, %s22, 0
      %s275 = sadd.s32 %s274, %s272
      %s276 = smul.addr %s275, 8
      %s277 = scalar_lea.vmem %s5, %s276
      %s278 = smul.u32 4, %s21
      %p279 = scmp.lt.s32.totalorder %s278, 15
      %s280 = scalar_select %p279, %s278, 15
      %p281 = scmp.lt.s32.totalorder %s22, 0
      %s282 = scalar_select %p281, %s22, 0
      %s283 = sadd.s32 %s282, %s280
      %s284 = smul.addr %s283, 8
      %s285 = scalar_lea.vmem %s0, %s284
      %s286 = smul.u32 4, %s21
      %s287 = smul.u32 4, %s21
      %p288 = scmp.lt.s32.totalorder %s287, 15
      %s289 = scalar_select %p288, %s287, 15
      %p290 = scmp.lt.s32.totalorder %s22, 0
      %s291 = scalar_select %p290, %s22, 0
      %s292 = sadd.s32 %s291, %s289
      %s293 = smul.addr %s292, 8
      %s294 = scalar_lea.vmem %s1, %s293
      %s295 = smul.u32 4, %s21
      %s296 = smul.u32 2, %s21
      %p297 = scmp.lt.s32.totalorder %s296, 7
      %s298 = scalar_select %p297, %s296, 7
      %p299 = scmp.lt.s32.totalorder %s22, 0
      %s300 = scalar_select %p299, %s22, 0
      %s301 = sadd.s32 %s300, %s298
      %s302 = smul.addr %s301, 8
      %s303 = scalar_lea.vmem %s4, %s302
      %s304 = smul.u32 2, %s21
      %s305 = smul.u32 2, %s21
      %p306 = scmp.lt.s32.totalorder %s305, 7
      %s307 = scalar_select %p306, %s305, 7
      %p308 = scmp.lt.s32.totalorder %s22, 0
      %s309 = scalar_select %p308, %s22, 0
      %s310 = sadd.s32 %s309, %s307
      %s311 = smul.addr %s310, 8
      %s312 = scalar_lea.vmem %s5, %s311
      %s313 = smul.u32 2, %s21
      %v314 = vld [vmem:[%s285] ss:$2 sm:$0xff]
      %s315 = scalar_lea.vmem %s285, 16
      %v316 = vld [vmem:[%s315] ss:$2 sm:$0xff]
      %s317 = scalar_lea.vmem %s285, 1
      %v318 = vld [vmem:[%s317] ss:$2 sm:$0xff]
      %s319 = scalar_lea.vmem %s285, 17
      %v320 = vld [vmem:[%s319] ss:$2 sm:$0xff]
      %v321 = vld [vmem:[%s294] ss:$2 sm:$0xff]
      %s322 = scalar_lea.vmem %s294, 16
      %v323 = vld [vmem:[%s322] ss:$2 sm:$0xff]
      %s324 = scalar_lea.vmem %s294, 1
      %v325 = vld [vmem:[%s324] ss:$2 sm:$0xff]
      %s326 = scalar_lea.vmem %s294, 17
      %v327 = vld [vmem:[%s326] ss:$2 sm:$0xff]
      %v328 = vmul.f32 %v314, %v321
      %v329 = vmul.f32 %v316, %v323
      %v330 = vmul.f32 %v318, %v325
      %v331 = vmul.f32 %v320, %v327
      %v332 = vmax.f32 %v328, %v330
      %v333 = vmax.f32 %v329, %v331
      %v334 = vmax.f32 %v321, %v325
      %v335 = vmax.f32 %v323, %v327
      %v336 = vld [vmem:[%s2] sm:$0xff]
      %v337 = vld [vmem:[%s2 + $0x8] sm:$0xff]
      %v338 = vld [vmem:[%s3] sm:$0xff]
      %v339 = vld [vmem:[%s3 + $0x8] sm:$0xff]
      %vm340 = vcmask 130048
      %v342 = vsel %vm340, %v332, 0
      %v345 = vsel %vm340, %v333, 0
      %347 = vmatpush.msra.mxu0 0.0
      %348 = vmatpush.msra.mxu0 0.0
      %349 = vmatpush.msra.mxu0 0.0
      %350 = vmatpush.msra.mxu0 0.0
      %351 = vmatpush.msra.mxu0 0.0
      %352 = vmatpush.msra.mxu0 0.0
      %353 = vmatpush.msra.mxu0 0.0
      %354 = vmatpush.msra.mxu0 0.0
      %355 = vmatpush.msra.mxu0 0.0
      %356 = vmatpush.msra.mxu0 0.0
      %357 = vmatpush.msra.mxu0 0.0
      %358 = vmatpush.msra.mxu0 0.0
      %359 = vmatpush.msra.mxu0 0.0
      %360 = vmatpush.msra.mxu0 0.0
      %361 = vmatpush.msra.mxu0 %v337
      %362 = vmatpush.msra.mxu0 %v336
      %363 = vmatmul.f32.gmra.mxu0 %v342
      %v364 = vpop.f32.mrf.mxu0
      %v365 = vadd.f32 0.0, %v364
      %366 = vmatmul.f32.gmra.mxu0 %v345
      %v367 = vpop.f32.mrf.mxu0
      %v368 = vadd.f32 0.0, %v367
      %369 = vdwg.mxu0
      %370 = vmatpush.msra.mxu0 0.0
      %371 = vmatpush.msra.mxu0 0.0
      %372 = vmatpush.msra.mxu0 0.0
      %373 = vmatpush.msra.mxu0 0.0
      %374 = vmatpush.msra.mxu0 0.0
      %375 = vmatpush.msra.mxu0 0.0
      %376 = vmatpush.msra.mxu0 0.0
      %377 = vmatpush.msra.mxu0 0.0
      %378 = vmatpush.msra.mxu0 0.0
      %379 = vmatpush.msra.mxu0 0.0
      %380 = vmatpush.msra.mxu0 0.0
      %381 = vmatpush.msra.mxu0 0.0
      %382 = vmatpush.msra.mxu0 0.0
      %383 = vmatpush.msra.mxu0 0.0
      %384 = vmatpush.msra.mxu0 %v339
      %385 = vmatpush.msra.mxu0 %v338
      %386 = vmatmul.f32.gmra.mxu0 %v342
      %v387 = vpop.f32.mrf.mxu0
      %v388 = vadd.f32 0.0, %v387
      %389 = vmatmul.f32.gmra.mxu0 %v345
      %v390 = vpop.f32.mrf.mxu0
      %v391 = vadd.f32 0.0, %v390
      %392 = vdwg.mxu0
      %v393 = vmax.f32 %v365, %v388
      %v394 = vmax.f32 %v368, %v391
      %v396 = vsel %vm340, %v334, 0
      %v399 = vsel %vm340, %v335, 0
      %401 = vmatpush.msra.mxu0 0.0
      %402 = vmatpush.msra.mxu0 0.0
      %403 = vmatpush.msra.mxu0 0.0
      %404 = vmatpush.msra.mxu0 0.0
      %405 = vmatpush.msra.mxu0 0.0
      %406 = vmatpush.msra.mxu0 0.0
      %407 = vmatpush.msra.mxu0 0.0
      %408 = vmatpush.msra.mxu0 0.0
      %409 = vmatpush.msra.mxu0 0.0
      %410 = vmatpush.msra.mxu0 0.0
      %411 = vmatpush.msra.mxu0 0.0
      %412 = vmatpush.msra.mxu0 0.0
      %413 = vmatpush.msra.mxu0 0.0
      %414 = vmatpush.msra.mxu0 0.0
      %415 = vmatpush.msra.mxu0 %v337
      %416 = vmatpush.msra.mxu0 %v336
      %417 = vmatmul.f32.gmra.mxu0 %v396
      %v418 = vpop.f32.mrf.mxu0
      %v419 = vadd.f32 0.0, %v418
      %420 = vmatmul.f32.gmra.mxu0 %v399
      %v421 = vpop.f32.mrf.mxu0
      %v422 = vadd.f32 0.0, %v421
      %423 = vdwg.mxu0
      %424 = vmatpush.msra.mxu0 0.0
      %425 = vmatpush.msra.mxu0 0.0
      %426 = vmatpush.msra.mxu0 0.0
      %427 = vmatpush.msra.mxu0 0.0
      %428 = vmatpush.msra.mxu0 0.0
      %429 = vmatpush.msra.mxu0 0.0
      %430 = vmatpush.msra.mxu0 0.0
      %431 = vmatpush.msra.mxu0 0.0
      %432 = vmatpush.msra.mxu0 0.0
      %433 = vmatpush.msra.mxu0 0.0
      %434 = vmatpush.msra.mxu0 0.0
      %435 = vmatpush.msra.mxu0 0.0
      %436 = vmatpush.msra.mxu0 0.0
      %437 = vmatpush.msra.mxu0 0.0
      %438 = vmatpush.msra.mxu0 %v339
      %439 = vmatpush.msra.mxu0 %v338
      %440 = vmatmul.f32.gmra.mxu0 %v396
      %v441 = vpop.f32.mrf.mxu0
      %v442 = vadd.f32 0.0, %v441
      %443 = vmatmul.f32.gmra.mxu0 %v399
      %v444 = vpop.f32.mrf.mxu0
      %v445 = vadd.f32 0.0, %v444
      %446 = vdwg.mxu0
      %v447 = vmax.f32 %v419, %v442
      %v448 = vmax.f32 %v422, %v445
      %v449 = vmax.f32 %v447, 1e-05
      %v450 = vmax.f32 %v448, 1e-05
      %v451 = vrcp.pop %v449
      %v452 = vrcp.pop %v450
      %v453 = vmul.f32 %v393, %v451
      %v454 = vmul.f32 %v394, %v452
      %vm455 = vcmask 64512
      %456 = vst.msk [vmem:[%s303] sm:$0xff] %vm455, %v453
      %457 = vst.msk [vmem:[%s303 + $0x8] sm:$0xff] %vm455, %v454
      %458 = vst.msk [vmem:[%s312] sm:$0xff] %vm455, %v447
      %459 = vst.msk [vmem:[%s312 + $0x8] sm:$0xff] %vm455, %v448
      %s460 = smul.u32 2, %s21
      %p461 = scmp.lt.s32.totalorder %s460, 7
      %s462 = scalar_select %p461, %s460, 7
      %p463 = scmp.lt.s32.totalorder %s22, 0
      %s464 = scalar_select %p463, %s22, 0
      %s465 = sadd.s32 %s464, %s462
      %s466 = smul.addr %s465, 8
      %s467 = scalar_lea.vmem %s4, %s466
      %s468 = smul.u32 2, %s21
      %p469 = scmp.lt.s32.totalorder %s468, 7
      %s470 = scalar_select %p469, %s468, 7
      %p471 = scmp.lt.s32.totalorder %s22, 0
      %s472 = scalar_select %p471, %s22, 0
      %s473 = sadd.s32 %s472, %s470
      %s474 = smul.addr %s473, 8
      %s475 = scalar_lea.vmem %s5, %s474
      // Predicated region
      $region37: #{tpu_custom_call.1} parent=35 // pred_check
        %p476 = pneg %p147
      $region38: #{tpu_custom_call.1} parent=35 // pred_check_branch
        %478 = sbr.rel (%p476) target = $region40
      $region39: #{tpu_custom_call.1} parent=35 // pred_region
        %s479 = smul.u32 2, %s21
      $region40: #{tpu_custom_call.1} parent=35 // pred_fallthru
        _
      // Predicated region
      $region41: #{tpu_custom_call.1} parent=35 // pred_check
        %p480 = pneg %p175
      $region42: #{tpu_custom_call.1} parent=35 // pred_check_branch
        %482 = sbr.rel (%p480) target = $region44
      $region43: #{tpu_custom_call.1} parent=35 // pred_region
        %s483 = smul.u32 2, %s21
      $region44: #{tpu_custom_call.1} parent=35 // pred_fallthru
        _
    $region36: #{tpu_custom_call.1} parent=5 // pred_fallthru
      _
    %p484 = scmp.le.s32.totalorder 2, %s12
    // Predicated region
    $region45: #{tpu_custom_call.1} parent=5 // pred_check
      %p485 = pneg %p484
    $region46: #{tpu_custom_call.1} parent=5 // pred_check_branch
      %487 = sbr.rel (%p485) target = $region48
    $region47: #{tpu_custom_call.1} parent=5 // pred_region
      %s488 = ssub.s32 %s12, 2
      // Predicated region
      $region49: #{tpu_custom_call.1} parent=47 // pred_check
        %p489 = pneg %p153
      $region50: #{tpu_custom_call.1} parent=47 // pred_check_branch
        %491 = sbr.rel (%p489) target = $region52
      $region51: #{tpu_custom_call.1} parent=47 // pred_region
        %s492 = smul.u32 2, %s23
        %p493 = scmp.lt.s32.totalorder %s492, 7
        %s494 = scalar_select %p493, %s492, 7
        %p495 = scmp.lt.s32.totalorder %s24, 0
        %s496 = scalar_select %p495, %s24, 0
        %s497 = sadd.s32 %s496, %s494
        %s498 = smul.addr %s497, 8
        %s499 = scalar_lea.vmem %s4, %s498
      $region52: #{tpu_custom_call.1} parent=47 // pred_fallthru
        _
      // Predicated region
      $region53: #{tpu_custom_call.1} parent=47 // pred_check
        %p500 = pneg %p181
      $region54: #{tpu_custom_call.1} parent=47 // pred_check_branch
        %502 = sbr.rel (%p500) target = $region56
      $region55: #{tpu_custom_call.1} parent=47 // pred_region
        %s503 = smul.u32 2, %s23
        %p504 = scmp.lt.s32.totalorder %s503, 7
        %s505 = scalar_select %p504, %s503, 7
        %p506 = scmp.lt.s32.totalorder %s24, 0
        %s507 = scalar_select %p506, %s24, 0
        %s508 = sadd.s32 %s507, %s505
        %s509 = smul.addr %s508, 8
        %s510 = scalar_lea.vmem %s5, %s509
      $region56: #{tpu_custom_call.1} parent=47 // pred_fallthru
        _
    $region48: #{tpu_custom_call.1} parent=5 // pred_fallthru
      _
  $region6: #{tpu_custom_call.1} parent=0 // loop_footer
    %s16 = sadd.s32 1, %s12
  $region7: #{tpu_custom_call.1} parent=0 // loop_footer_branch
    %11 = sbr.rel target = $region3
  $region8: #{tpu_custom_call.1} parent=0 // loop_exit
    _

</llo_original>
